<compile_context>
chip_gen: v7x
topology: tpu7x:2x2x1
jax: 0.10.0
libtpu: 0.0.40
codegen_flags: <defaults>
</compile_context>

<pallas_src>
import functools

import jax
import jax.numpy as jnp
from jax import lax
from jax.experimental import pallas as pl
from jax.experimental.pallas import tpu as pltpu

_F32 = 4  # bytes


# ----------------------------------------------------------------------------
# Kernel
# ----------------------------------------------------------------------------
def _attention_pool_kernel(x_ref, w1_ref, b1_ref, w2t_ref,
                           m_out_ref, l_out_ref, acc_out_ref,
                           m_sc, l_sc, acc_sc,
                           *, n_nodes, tile_n, tiles_per_split, use_bf16):
    o = pl.program_id(0)          # split index ("parallel", megacore chips only)
    i = pl.program_id(1)          # node-tile index within the split ("arbitrary")

    @pl.when(i == 0)
    def _():
        m_sc[...] = jnp.full_like(m_sc, -jnp.inf)
        l_sc[...] = jnp.zeros_like(l_sc)
        acc_sc[...] = jnp.zeros_like(acc_sc)

    tile_idx = o * tiles_per_split + i
    # Full tile <=> every nominal row of this grid point is a real node.  The
    # clamped/duplicated trailing tiles of a split and the remainder tile both
    # fail this test and take the (rare) masked branch.
    is_full = (tile_idx + 1) * tile_n <= n_nodes

    def gate_scores(x):
        # Gate MLP: Linear -> tanh on the MXU/VPU.
        if use_bf16:
            hmm = jnp.dot(x.astype(jnp.bfloat16),
                          w1_ref[...].astype(jnp.bfloat16),
                          preferred_element_type=jnp.float32)
        else:
            hmm = jnp.dot(x, w1_ref[...], preferred_element_type=jnp.float32)
        h = jnp.tanh(hmm + b1_ref[...])                       # [tile_n, H]
        # Second Linear ([H,1]) degenerates to VPU multiply + lane reduce.
        # b2 dropped (softmax over nodes is shift-invariant).
        return jnp.sum(h * w2t_ref[...], axis=-1, keepdims=True)  # [tile_n, 1]

    def update(x, g, guard):
        m_old = m_sc[...]                                      # [1, 1]
        m_new = jnp.maximum(m_old, jnp.max(g, axis=0, keepdims=True))
        if guard:
            # Fully-invalid tile would leave m_new == -inf; keep exp() finite.
            safe_m = jnp.where(m_new == -jnp.inf, 0.0, m_new)
        else:
            safe_m = m_new
        scale = jnp.exp(m_old - safe_m)                        # [1, 1]
        e = jnp.exp(g - safe_m)                                # [tile_n, 1]; invalid rows -> 0
        l_sc[...] = scale * l_sc[...] + jnp.sum(e, axis=0, keepdims=True)
        # Contract over the node axis on the MXU: e^T @ x -> [1, C].
        acc_sc[...] = scale * acc_sc[...] + lax.dot_general(
            e, x, dimension_numbers=(((0,), (0,)), ((), ())),
            preferred_element_type=jnp.float32)
        m_sc[...] = m_new

    @pl.when(is_full)
    def _():
        # Hot path: no row masking, no whole-tile select.
        x = x_ref[...]
        update(x, gate_scores(x), guard=False)

    @pl.when(jnp.logical_not(is_full))
    def _():
        # Cold path (at most once per split): sanitize out-of-range rows so
        # stale/garbage VMEM in the remainder block can never poison the
        # accumulators (0 * NaN would otherwise propagate through the MXU).
        row = tile_idx * tile_n + lax.broadcasted_iota(jnp.int32, (tile_n, 1), 0)
        valid = row < n_nodes
        x = jnp.where(valid, x_ref[...], 0.0)
        g = jnp.where(valid, gate_scores(x), -jnp.inf)
        update(x, g, guard=True)

    @pl.when(i == pl.num_programs(1) - 1)
    def _():
        m_out_ref[...] = m_sc[...][None]
        l_out_ref[...] = l_sc[...][None]
        acc_out_ref[...] = acc_sc[...][None]


# ----------------------------------------------------------------------------
# Hardware / sizing helpers
# ----------------------------------------------------------------------------
def _vmem_capacity_bytes():
    try:
        info = pltpu.get_tpu_info()
        for attr in ("vmem_capacity_bytes", "vmem_bytes", "vmem_size_bytes"):
            v = getattr(info, attr, None)
            if v:
                return int(v)
    except Exception:
        pass
    return 64 << 20   # conservative fallback (v7x-sized VMEM)


def _num_parallel_cores():
    """TensorCores one JAX device exposes to a Pallas 'parallel' grid axis."""
    try:
        kind = jax.devices()[0].device_kind.lower().replace(" ", "")
    except Exception:
        return 1
    if "lite" in kind or "v5e" in kind or "v6e" in kind:
        return 1                      # single-TC chips: a split is pure waste
    if "v4" in kind or "v5p" in kind or "v7" in kind or "7x" in kind:
        return 2                      # megacore / dual-TC chips
    return 1


def _derive_tile_n(n, c, h, vmem_budget, requested):
    if requested is None:
        # Resident weight blocks (double-buffered by the default pipeline) +
        # output blocks, which do not scale with tile_n.
        fixed = _F32 * (2 * (c * h + 2 * h) + 4 * c + 64)
        headroom = 8 << 20
        avail = max(vmem_budget - fixed - headroom, 1 << 20)
        # Per-row cost: x double-buffer (2*C) + gate temp (H) + g/e temps.
        per_row = _F32 * (2 * c + h + 8)
        requested = int(avail // per_row)
        requested = max(256, min(requested, 2048))
    if requested >= n:
        return n                      # whole array in one tile (full-dim block)
    return max(8, (requested // 8) * 8)


# ----------------------------------------------------------------------------
# Wrapper
# ----------------------------------------------------------------------------
def attention_pool(x, w1, b1, w2, b2=None, *, tile_n=None,
                   xla_fallback_max_nodes=64, use_bf16_matmul=False):
    """GlobalAttention pooling (nn=None) over a single graph.

    x:  [N, C] float32 node features
    w1: [C, H], b1: [1, H]   first gate Linear
    w2: [H, 1], b2: [1, 1]   second gate Linear (b2 is a mathematical no-op
                             because the node-axis softmax is shift-invariant)
    Returns the pooled representation of shape [1, C].
    """
    n, c = x.shape
    hdim = w1.shape[1]
    del b2  # shift-invariant through the node-axis softmax

    x = x.astype(jnp.float32)
    w1 = jnp.asarray(w1, jnp.float32)
    b1 = jnp.asarray(b1, jnp.float32).reshape(1, hdim)
    w2t = jnp.asarray(w2, jnp.float32).reshape(hdim, 1).T      # [1, H]

    # Tiny graphs: kernel launch + lane padding overhead dominates; plain XLA wins.
    if n <= xla_fallback_max_nodes:
        h = jnp.tanh(x @ w1 + b1)
        g = jnp.sum(h * w2t, axis=-1, keepdims=True)
        alpha = jax.nn.softmax(g, axis=0)
        return jnp.sum(alpha * x, axis=0, keepdims=True)

    # Generation-aware VMEM budget (~48 MiB on v7x, ~96 MiB on v5e/v6e).
    vmem_capacity = _vmem_capacity_bytes()
    gen_cap = (vmem_capacity * 3) // 4

    tile_n = _derive_tile_n(n, c, hdim, gen_cap, tile_n)
    num_tiles = pl.cdiv(n, tile_n)

    # Split the node stream across TensorCores only where it is a real split.
    cores = _num_parallel_cores()
    num_splits = cores if (cores > 1 and num_tiles >= cores) else 1
    tiles_per_split = pl.cdiv(num_tiles, num_splits)

    kernel = functools.partial(
        _attention_pool_kernel,
        n_nodes=n, tile_n=tile_n, tiles_per_split=tiles_per_split,
        use_bf16=use_bf16_matmul)

    def x_map(o, i):
        # Clamp duplicated trailing tiles in-bounds; the masked branch zeroes them.
        return (jnp.minimum(o * tiles_per_split + i, num_tiles - 1), 0)

    # Exact-ish VMEM requirement for the chosen tile; never clamp below it.
    needed = _F32 * (2 * tile_n * c                 # x, double-buffered
                     + 2 * (c * hdim + 2 * hdim)    # resident weight blocks (2 bufs each)
                     + tile_n * (hdim + 8)          # gate temp + g/e temps
                     + 4 * c + 64)                  # acc scratch + output blocks + slop
    vmem_limit = int(min(max(needed + (16 << 20), 32 << 20), gen_cap))
    if vmem_limit < needed + (2 << 20):
        vmem_limit = int(needed + (2 << 20))

    cost = pl.CostEstimate(
        flops=int(2 * n * c * hdim + 2 * n * hdim + 2 * n * c),
        transcendentals=int(n * hdim + n),
        bytes_accessed=int(_F32 * (n * c + c * hdim + 2 * hdim
                                   + num_splits * (2 + c))),
    )

    m_p, l_p, acc_p = pl.pallas_call(
        kernel,
        out_shape=(
            jax.ShapeDtypeStruct((num_splits, 1, 1), jnp.float32),
            jax.ShapeDtypeStruct((num_splits, 1, 1), jnp.float32),
            jax.ShapeDtypeStruct((num_splits, 1, c), jnp.float32),
        ),
        grid_spec=pltpu.PrefetchScalarGridSpec(
            num_scalar_prefetch=0,
            grid=(num_splits, tiles_per_split),
            in_specs=[
                pl.BlockSpec((tile_n, c), x_map),                   # x, unpadded
                pl.BlockSpec((c, hdim), lambda o, i: (0, 0)),       # w1 (resident)
                pl.BlockSpec((1, hdim), lambda o, i: (0, 0)),       # b1 (resident)
                pl.BlockSpec((1, hdim), lambda o, i: (0, 0)),       # w2^T (resident)
            ],
            out_specs=[
                pl.BlockSpec((1, 1, 1), lambda o, i: (o, 0, 0)),
                pl.BlockSpec((1, 1, 1), lambda o, i: (o, 0, 0)),
                pl.BlockSpec((1, 1, c), lambda o, i: (o, 0, 0)),
            ],
            scratch_shapes=[
                pltpu.VMEM((1, 1), jnp.float32),    # running max m
                pltpu.VMEM((1, 1), jnp.float32),    # running denom l
                pltpu.VMEM((1, c), jnp.float32),    # running weighted sum
            ],
        ),
        compiler_params=pltpu.CompilerParams(
            dimension_semantics=("parallel", "arbitrary"),
            vmem_limit_bytes=vmem_limit,
        ),
        cost_estimate=cost,
    )(x, w1, b1, w2t)

    # Epilogue: combine per-split online-softmax partials, normalize once.
    m_max = jnp.max(m_p, axis=0)                      # [1, 1]
    wgt = jnp.exp(m_p - m_max)                        # [S, 1, 1]
    l_tot = jnp.sum(wgt * l_p, axis=0)                # [1, 1]
    acc_tot = jnp.sum(wgt * acc_p, axis=0)            # [1, C]
    return acc_tot / l_tot


# ----------------------------------------------------------------------------
# Reference + tests
# ----------------------------------------------------------------------------
def _reference(x, w1, b1, w2, b2):
    h = jnp.tanh(x @ w1 + b1)
    g = h @ w2 + b2
    alpha = jax.nn.softmax(g, axis=0)
    return jnp.sum(alpha * x, axis=0, keepdims=True)


if __name__ == "__main__":
    # Small shapes consistent with the module: N nodes, in_channels, hidden_channels.
    N, IN_CH, HIDDEN = 16, 8, 32

    key = jax.random.PRNGKey(0)
    k_x, k_w1, k_b1, k_w2, k_b2, k_x2 = jax.random.split(key, 6)

    x = jax.random.normal(k_x, (N, IN_CH), dtype=jnp.float32)
    w1 = jax.random.normal(k_w1, (IN_CH, HIDDEN), dtype=jnp.float32) * 0.1
    b1 = jax.random.normal(k_b1, (1, HIDDEN), dtype=jnp.float32) * 0.1
    w2 = jax.random.normal(k_w2, (HIDDEN, 1), dtype=jnp.float32) * 0.1
    b2 = jax.random.normal(k_b2, (1, 1), dtype=jnp.float32) * 0.1

    ref = _reference(x, w1, b1, w2, b2)   # reference keeps b2; kernel drops it (shift-invariant)

    # 1) Small graph, kernel path forced (single full tile).
    out = jax.block_until_ready(
        attention_pool(x, w1, b1, w2, b2, xla_fallback_max_nodes=0))
    assert out.shape == (1, IN_CH), out.shape
    assert jnp.allclose(out, ref, atol=1e-5, rtol=1e-5), (out, ref)

    # 2) Small graph, default path (pure-XLA fast path for tiny N).
    out_fast = jax.block_until_ready(attention_pool(x, w1, b1, w2, b2))
    assert jnp.allclose(out_fast, ref, atol=1e-5, rtol=1e-5), (out_fast, ref)

    # 3) Streaming paths: budget-driven single tile, and many tiles with a
    #    partial remainder tile (exercises the masked cold branch).
    N2 = 1000
    x2 = jax.random.normal(k_x2, (N2, IN_CH), dtype=jnp.float32)
    ref2 = _reference(x2, w1, b1, w2, b2)

    out2 = jax.block_until_ready(attention_pool(x2, w1, b1, w2, b2))
    assert out2.shape == (1, IN_CH), out2.shape
    assert jnp.allclose(out2, ref2, atol=1e-4, rtol=1e-4), (out2, ref2)

    out3 = jax.block_until_ready(attention_pool(x2, w1, b1, w2, b2, tile_n=128))
    assert jnp.allclose(out3, ref2, atol=1e-4, rtol=1e-4), (out3, ref2)

    # NOTE: self.proj (Dropout + Linear) is never used in AttentionPool.forward(),
    # so it is intentionally not implemented here.
    print("KERNEL_OK")
</pallas_src>

<mosaic_0001>
module attributes {stable_mosaic.version = 11 : i64} {
  func.func @_attention_pool_kernel(%arg0: i32, %arg1: i32, %arg2: memref<16x8xf32, #tpu.memory_space<vmem>>, %arg3: memref<8x32xf32, #tpu.memory_space<vmem>>, %arg4: memref<1x32xf32, #tpu.memory_space<vmem>>, %arg5: memref<1x32xf32, #tpu.memory_space<vmem>>, %arg6: memref<1x1x1xf32, #tpu.memory_space<vmem>>, %arg7: memref<1x1x1xf32, #tpu.memory_space<vmem>>, %arg8: memref<1x1x8xf32, #tpu.memory_space<vmem>>, %arg9: memref<1x1xf32, #tpu.memory_space<vmem>>, %arg10: memref<1x1xf32, #tpu.memory_space<vmem>>, %arg11: memref<1x8xf32, #tpu.memory_space<vmem>>) attributes {dimension_semantics = [#tpu.dimension_semantics<parallel>, #tpu.dimension_semantics<arbitrary>], iteration_bounds = array<i64: 1, 1>, scalar_prefetch = 0 : i64, scratch_operands = 3 : i64, tpu.core_type = #tpu.core_type<tc>, window_params = [{transform_indices = @transform_0, window_bounds = array<i64: 16, 8>}, {pipeline_mode = #tpu.pipeline_mode<synchronous>, transform_indices = @transform_1, window_bounds = array<i64: 8, 32>}, {pipeline_mode = #tpu.pipeline_mode<synchronous>, transform_indices = @transform_2, window_bounds = array<i64: 1, 32>}, {pipeline_mode = #tpu.pipeline_mode<synchronous>, transform_indices = @transform_3, window_bounds = array<i64: 1, 32>}, {transform_indices = @transform_4, window_bounds = array<i64: 1, 1, 1>}, {transform_indices = @transform_5, window_bounds = array<i64: 1, 1, 1>}, {transform_indices = @transform_6, window_bounds = array<i64: 1, 1, 8>}]} {
    %c0_i32 = arith.constant 0 : i32
    %0 = arith.cmpi eq, %arg1, %c0_i32 : i32
    %1 = arith.extui %0 : i1 to i32
    %c0_i32_0 = arith.constant 0 : i32
    %2 = arith.cmpi ne, %1, %c0_i32_0 : i32
    scf.if %2 {
      %cst = arith.constant 0xFF800000 : f32
      %16 = vector.broadcast %cst : f32 to vector<1x1xf32>
      %c0 = arith.constant 0 : index
      %c0_7 = arith.constant 0 : index
      %17 = vector.load %arg9[%c0, %c0_7] : memref<1x1xf32, #tpu.memory_space<vmem>>, vector<1x1xf32>
      tpu.vector_store %arg9[%c0, %c0_7], %16 {strides = array<i32>} : memref<1x1xf32, #tpu.memory_space<vmem>>, vector<1x1xf32>,
      %cst_8 = arith.constant 0.000000e+00 : f32
      %18 = vector.broadcast %cst_8 : f32 to vector<1x1xf32>
      %c0_9 = arith.constant 0 : index
      %c0_10 = arith.constant 0 : index
      %19 = vector.load %arg10[%c0_9, %c0_10] : memref<1x1xf32, #tpu.memory_space<vmem>>, vector<1x1xf32>
      tpu.vector_store %arg10[%c0_9, %c0_10], %18 {strides = array<i32>} : memref<1x1xf32, #tpu.memory_space<vmem>>, vector<1x1xf32>,
      %cst_11 = arith.constant 0.000000e+00 : f32
      %20 = vector.broadcast %cst_11 : f32 to vector<1x8xf32>
      %c0_12 = arith.constant 0 : index
      %c0_13 = arith.constant 0 : index
      %21 = vector.load %arg11[%c0_12, %c0_13] : memref<1x8xf32, #tpu.memory_space<vmem>>, vector<1x8xf32>
      tpu.vector_store %arg11[%c0_12, %c0_13], %20 {strides = array<i32>} : memref<1x8xf32, #tpu.memory_space<vmem>>, vector<1x8xf32>,
    } else {
    }
    %c1_i32 = arith.constant 1 : i32
    %3 = arith.muli %arg0, %c1_i32 : i32
    %4 = arith.addi %3, %arg1 : i32
    %c1_i32_1 = arith.constant 1 : i32
    %5 = arith.addi %4, %c1_i32_1 : i32
    %c16_i32 = arith.constant 16 : i32
    %6 = arith.muli %5, %c16_i32 : i32
    %c16_i32_2 = arith.constant 16 : i32
    %7 = arith.cmpi sle, %6, %c16_i32_2 : i32
    %8 = arith.extui %7 : i1 to i32
    %c0_i32_3 = arith.constant 0 : i32
    %9 = arith.cmpi ne, %8, %c0_i32_3 : i32
    scf.if %9 {
      %c0 = arith.constant 0 : index
      %c0_7 = arith.constant 0 : index
      %16 = vector.load %arg2[%c0, %c0_7] : memref<16x8xf32, #tpu.memory_space<vmem>>, vector<16x8xf32>
      %c0_8 = arith.constant 0 : index
      %c0_9 = arith.constant 0 : index
      %17 = vector.load %arg3[%c0_8, %c0_9] : memref<8x32xf32, #tpu.memory_space<vmem>>, vector<8x32xf32>
      %cst = arith.constant dense<0.000000e+00> : vector<16x32xf32>
      %18 = tpu.matmul %16, %17, %cst {dimension_numbers = #tpu.dot_dimension_numbers<[1], [0], [0], [1], [0, 0, 1, 1], [], []>} : vector<16x8xf32>, vector<8x32xf32>, vector<16x32xf32> -> vector<16x32xf32>
      %c0_10 = arith.constant 0 : index
      %c0_11 = arith.constant 0 : index
      %19 = vector.load %arg4[%c0_10, %c0_11] : memref<1x32xf32, #tpu.memory_space<vmem>>, vector<1x32xf32>
      %20 = vector.broadcast %19 : vector<1x32xf32> to vector<16x32xf32>
      %21 = arith.addf %18, %20 : vector<16x32xf32>
      %22 = math.tanh %21 : vector<16x32xf32>
      %c0_12 = arith.constant 0 : index
      %c0_13 = arith.constant 0 : index
      %23 = vector.load %arg5[%c0_12, %c0_13] : memref<1x32xf32, #tpu.memory_space<vmem>>, vector<1x32xf32>
      %24 = vector.broadcast %23 : vector<1x32xf32> to vector<16x32xf32>
      %25 = arith.mulf %22, %24 : vector<16x32xf32>
      %cst_14 = arith.constant dense<0.000000e+00> : vector<16xf32>
      %26 = vector.multi_reduction <add>, %25, %cst_14 [1] : vector<16x32xf32> to vector<16xf32>
      %27 = vector.shape_cast %26 : vector<16xf32> to vector<16x1xf32>
      %c0_15 = arith.constant 0 : index
      %c0_16 = arith.constant 0 : index
      %28 = vector.load %arg9[%c0_15, %c0_16] : memref<1x1xf32, #tpu.memory_space<vmem>>, vector<1x1xf32>
      %cst_17 = arith.constant dense<0xFF800000> : vector<1xf32>
      %29 = vector.multi_reduction <maximumf>, %27, %cst_17 [0] : vector<16x1xf32> to vector<1xf32>
      %30 = vector.shape_cast %29 : vector<1xf32> to vector<1x1xf32>
      %31 = arith.maximumf %28, %30 : vector<1x1xf32>
      %32 = arith.subf %28, %31 : vector<1x1xf32>
      %33 = math.exp %32 : vector<1x1xf32>
      %34 = vector.broadcast %31 : vector<1x1xf32> to vector<16x1xf32>
      %35 = arith.subf %27, %34 : vector<16x1xf32>
      %36 = math.exp %35 : vector<16x1xf32>
      %c0_18 = arith.constant 0 : index
      %c0_19 = arith.constant 0 : index
      %37 = vector.load %arg10[%c0_18, %c0_19] : memref<1x1xf32, #tpu.memory_space<vmem>>, vector<1x1xf32>
      %38 = arith.mulf %33, %37 : vector<1x1xf32>
      %cst_20 = arith.constant dense<0.000000e+00> : vector<1xf32>
      %39 = vector.multi_reduction <add>, %36, %cst_20 [0] : vector<16x1xf32> to vector<1xf32>
      %40 = vector.shape_cast %39 : vector<1xf32> to vector<1x1xf32>
      %41 = arith.addf %38, %40 : vector<1x1xf32>
      %c0_21 = arith.constant 0 : index
      %c0_22 = arith.constant 0 : index
      %42 = vector.load %arg10[%c0_21, %c0_22] : memref<1x1xf32, #tpu.memory_space<vmem>>, vector<1x1xf32>
      tpu.vector_store %arg10[%c0_21, %c0_22], %41 {strides = array<i32>} : memref<1x1xf32, #tpu.memory_space<vmem>>, vector<1x1xf32>,
      %c0_23 = arith.constant 0 : index
      %c0_24 = arith.constant 0 : index
      %43 = vector.load %arg11[%c0_23, %c0_24] : memref<1x8xf32, #tpu.memory_space<vmem>>, vector<1x8xf32>
      %44 = vector.broadcast %33 : vector<1x1xf32> to vector<1x8xf32>
      %45 = arith.mulf %44, %43 : vector<1x8xf32>
      %cst_25 = arith.constant dense<0.000000e+00> : vector<1x8xf32>
      %46 = tpu.matmul %36, %16, %cst_25 {dimension_numbers = #tpu.dot_dimension_numbers<[0], [0], [1], [1], [0, 1, 1, 1], [], []>} : vector<16x1xf32>, vector<16x8xf32>, vector<1x8xf32> -> vector<1x8xf32>
      %47 = arith.addf %45, %46 : vector<1x8xf32>
      %c0_26 = arith.constant 0 : index
      %c0_27 = arith.constant 0 : index
      %48 = vector.load %arg11[%c0_26, %c0_27] : memref<1x8xf32, #tpu.memory_space<vmem>>, vector<1x8xf32>
      tpu.vector_store %arg11[%c0_26, %c0_27], %47 {strides = array<i32>} : memref<1x8xf32, #tpu.memory_space<vmem>>, vector<1x8xf32>,
      %c0_28 = arith.constant 0 : index
      %c0_29 = arith.constant 0 : index
      %49 = vector.load %arg9[%c0_28, %c0_29] : memref<1x1xf32, #tpu.memory_space<vmem>>, vector<1x1xf32>
      tpu.vector_store %arg9[%c0_28, %c0_29], %31 {strides = array<i32>} : memref<1x1xf32, #tpu.memory_space<vmem>>, vector<1x1xf32>,
    } else {
    }
    %true = arith.constant true
    %10 = arith.xori %7, %true : i1
    %11 = arith.extui %10 : i1 to i32
    %c0_i32_4 = arith.constant 0 : i32
    %12 = arith.cmpi ne, %11, %c0_i32_4 : i32
    scf.if %12 {
      %c16_i32_7 = arith.constant 16 : i32
      %16 = arith.muli %4, %c16_i32_7 : i32
      %17 = tpu.iota {dimensions = array<i32: 0>} : vector<16x1xi32>
      %18 = vector.broadcast %16 : i32 to vector<16x1xi32>
      %19 = arith.addi %18, %17 : vector<16x1xi32>
      %c16_i32_8 = arith.constant 16 : i32
      %20 = vector.broadcast %c16_i32_8 : i32 to vector<16x1xi32>
      %21 = arith.cmpi slt, %19, %20 : vector<16x1xi32>
      %c0 = arith.constant 0 : index
      %c0_9 = arith.constant 0 : index
      %22 = vector.load %arg2[%c0, %c0_9] : memref<16x8xf32, #tpu.memory_space<vmem>>, vector<16x8xf32>
      %cst = arith.constant 0.000000e+00 : f32
      %23 = vector.shape_cast %21 : vector<16x1xi1> to vector<16x1xi1>
      %24 = vector.broadcast %23 : vector<16x1xi1> to vector<16x8xi1>
      %25 = vector.broadcast %cst : f32 to vector<16x8xf32>
      %26 = arith.select %24, %22, %25 : vector<16x8xi1>, vector<16x8xf32>
      %c0_10 = arith.constant 0 : index
      %c0_11 = arith.constant 0 : index
      %27 = vector.load %arg3[%c0_10, %c0_11] : memref<8x32xf32, #tpu.memory_space<vmem>>, vector<8x32xf32>
      %cst_12 = arith.constant dense<0.000000e+00> : vector<16x32xf32>
      %28 = tpu.matmul %26, %27, %cst_12 {dimension_numbers = #tpu.dot_dimension_numbers<[1], [0], [0], [1], [0, 0, 1, 1], [], []>} : vector<16x8xf32>, vector<8x32xf32>, vector<16x32xf32> -> vector<16x32xf32>
      %c0_13 = arith.constant 0 : index
      %c0_14 = arith.constant 0 : index
      %29 = vector.load %arg4[%c0_13, %c0_14] : memref<1x32xf32, #tpu.memory_space<vmem>>, vector<1x32xf32>
      %30 = vector.broadcast %29 : vector<1x32xf32> to vector<16x32xf32>
      %31 = arith.addf %28, %30 : vector<16x32xf32>
      %32 = math.tanh %31 : vector<16x32xf32>
      %c0_15 = arith.constant 0 : index
      %c0_16 = arith.constant 0 : index
      %33 = vector.load %arg5[%c0_15, %c0_16] : memref<1x32xf32, #tpu.memory_space<vmem>>, vector<1x32xf32>
      %34 = vector.broadcast %33 : vector<1x32xf32> to vector<16x32xf32>
      %35 = arith.mulf %32, %34 : vector<16x32xf32>
      %cst_17 = arith.constant dense<0.000000e+00> : vector<16xf32>
      %36 = vector.multi_reduction <add>, %35, %cst_17 [1] : vector<16x32xf32> to vector<16xf32>
      %37 = vector.shape_cast %36 : vector<16xf32> to vector<16x1xf32>
      %cst_18 = arith.constant 0xFF800000 : f32
      %38 = vector.broadcast %cst_18 : f32 to vector<16x1xf32>
      %39 = arith.select %21, %37, %38 : vector<16x1xi1>, vector<16x1xf32>
      %c0_19 = arith.constant 0 : index
      %c0_20 = arith.constant 0 : index
      %40 = vector.load %arg9[%c0_19, %c0_20] : memref<1x1xf32, #tpu.memory_space<vmem>>, vector<1x1xf32>
      %cst_21 = arith.constant dense<0xFF800000> : vector<1xf32>
      %41 = vector.multi_reduction <maximumf>, %39, %cst_21 [0] : vector<16x1xf32> to vector<1xf32>
      %42 = vector.shape_cast %41 : vector<1xf32> to vector<1x1xf32>
      %43 = arith.maximumf %40, %42 : vector<1x1xf32>
      %cst_22 = arith.constant 0xFF800000 : f32
      %44 = vector.broadcast %cst_22 : f32 to vector<1x1xf32>
      %45 = arith.cmpf oeq, %43, %44 : vector<1x1xf32>
      %cst_23 = arith.constant 0.000000e+00 : f32
      %46 = vector.broadcast %cst_23 : f32 to vector<1x1xf32>
      %47 = arith.select %45, %46, %43 : vector<1x1xi1>, vector<1x1xf32>
      %48 = arith.subf %40, %47 : vector<1x1xf32>
      %49 = math.exp %48 : vector<1x1xf32>
      %50 = vector.broadcast %47 : vector<1x1xf32> to vector<16x1xf32>
      %51 = arith.subf %39, %50 : vector<16x1xf32>
      %52 = math.exp %51 : vector<16x1xf32>
      %c0_24 = arith.constant 0 : index
      %c0_25 = arith.constant 0 : index
      %53 = vector.load %arg10[%c0_24, %c0_25] : memref<1x1xf32, #tpu.memory_space<vmem>>, vector<1x1xf32>
      %54 = arith.mulf %49, %53 : vector<1x1xf32>
      %cst_26 = arith.constant dense<0.000000e+00> : vector<1xf32>
      %55 = vector.multi_reduction <add>, %52, %cst_26 [0] : vector<16x1xf32> to vector<1xf32>
      %56 = vector.shape_cast %55 : vector<1xf32> to vector<1x1xf32>
      %57 = arith.addf %54, %56 : vector<1x1xf32>
      %c0_27 = arith.constant 0 : index
      %c0_28 = arith.constant 0 : index
      %58 = vector.load %arg10[%c0_27, %c0_28] : memref<1x1xf32, #tpu.memory_space<vmem>>, vector<1x1xf32>
      tpu.vector_store %arg10[%c0_27, %c0_28], %57 {strides = array<i32>} : memref<1x1xf32, #tpu.memory_space<vmem>>, vector<1x1xf32>,
      %c0_29 = arith.constant 0 : index
      %c0_30 = arith.constant 0 : index
      %59 = vector.load %arg11[%c0_29, %c0_30] : memref<1x8xf32, #tpu.memory_space<vmem>>, vector<1x8xf32>
      %60 = vector.broadcast %49 : vector<1x1xf32> to vector<1x8xf32>
      %61 = arith.mulf %60, %59 : vector<1x8xf32>
      %cst_31 = arith.constant dense<0.000000e+00> : vector<1x8xf32>
      %62 = tpu.matmul %52, %26, %cst_31 {dimension_numbers = #tpu.dot_dimension_numbers<[0], [0], [1], [1], [0, 1, 1, 1], [], []>} : vector<16x1xf32>, vector<16x8xf32>, vector<1x8xf32> -> vector<1x8xf32>
      %63 = arith.addf %61, %62 : vector<1x8xf32>
      %c0_32 = arith.constant 0 : index
      %c0_33 = arith.constant 0 : index
      %64 = vector.load %arg11[%c0_32, %c0_33] : memref<1x8xf32, #tpu.memory_space<vmem>>, vector<1x8xf32>
      tpu.vector_store %arg11[%c0_32, %c0_33], %63 {strides = array<i32>} : memref<1x8xf32, #tpu.memory_space<vmem>>, vector<1x8xf32>,
      %c0_34 = arith.constant 0 : index
      %c0_35 = arith.constant 0 : index
      %65 = vector.load %arg9[%c0_34, %c0_35] : memref<1x1xf32, #tpu.memory_space<vmem>>, vector<1x1xf32>
      tpu.vector_store %arg9[%c0_34, %c0_35], %43 {strides = array<i32>} : memref<1x1xf32, #tpu.memory_space<vmem>>, vector<1x1xf32>,
    } else {
    }
    %c0_i32_5 = arith.constant 0 : i32
    %13 = arith.cmpi eq, %arg1, %c0_i32_5 : i32
    %14 = arith.extui %13 : i1 to i32
    %c0_i32_6 = arith.constant 0 : i32
    %15 = arith.cmpi ne, %14, %c0_i32_6 : i32
    scf.if %15 {
      %c0 = arith.constant 0 : index
      %c0_7 = arith.constant 0 : index
      %16 = vector.load %arg9[%c0, %c0_7] : memref<1x1xf32, #tpu.memory_space<vmem>>, vector<1x1xf32>
      %17 = vector.shape_cast %16 : vector<1x1xf32> to vector<1x1x1xf32>
      %c0_8 = arith.constant 0 : index
      %c0_9 = arith.constant 0 : index
      %c0_10 = arith.constant 0 : index
      %18 = vector.load %arg6[%c0_8, %c0_9, %c0_10] : memref<1x1x1xf32, #tpu.memory_space<vmem>>, vector<1x1x1xf32>
      tpu.vector_store %arg6[%c0_8, %c0_9, %c0_10], %17 {strides = array<i32>} : memref<1x1x1xf32, #tpu.memory_space<vmem>>, vector<1x1x1xf32>,
      %c0_11 = arith.constant 0 : index
      %c0_12 = arith.constant 0 : index
      %19 = vector.load %arg10[%c0_11, %c0_12] : memref<1x1xf32, #tpu.memory_space<vmem>>, vector<1x1xf32>
      %20 = vector.shape_cast %19 : vector<1x1xf32> to vector<1x1x1xf32>
      %c0_13 = arith.constant 0 : index
      %c0_14 = arith.constant 0 : index
      %c0_15 = arith.constant 0 : index
      %21 = vector.load %arg7[%c0_13, %c0_14, %c0_15] : memref<1x1x1xf32, #tpu.memory_space<vmem>>, vector<1x1x1xf32>
      tpu.vector_store %arg7[%c0_13, %c0_14, %c0_15], %20 {strides = array<i32>} : memref<1x1x1xf32, #tpu.memory_space<vmem>>, vector<1x1x1xf32>,
      %c0_16 = arith.constant 0 : index
      %c0_17 = arith.constant 0 : index
      %22 = vector.load %arg11[%c0_16, %c0_17] : memref<1x8xf32, #tpu.memory_space<vmem>>, vector<1x8xf32>
      %23 = vector.shape_cast %22 : vector<1x8xf32> to vector<1x1x8xf32>
      %c0_18 = arith.constant 0 : index
      %c0_19 = arith.constant 0 : index
      %c0_20 = arith.constant 0 : index
      %24 = vector.load %arg8[%c0_18, %c0_19, %c0_20] : memref<1x1x8xf32, #tpu.memory_space<vmem>>, vector<1x1x8xf32>
      tpu.vector_store %arg8[%c0_18, %c0_19, %c0_20], %23 {strides = array<i32>} : memref<1x1x8xf32, #tpu.memory_space<vmem>>, vector<1x1x8xf32>,
    } else {
    }
    return
  }
  func.func @transform_0(%arg0: i32, %arg1: i32) -> (i32, i32) {
    %c1_i32 = arith.constant 1 : i32
    %0 = arith.muli %arg0, %c1_i32 : i32
    %1 = arith.addi %0, %arg1 : i32
    %c0_i32 = arith.constant 0 : i32
    %2 = arith.minsi %1, %c0_i32 : i32
    %c0_i32_0 = arith.constant 0 : i32
    %c0_i32_1 = arith.constant 0 : i32
    return %2, %c0_i32_0 : i32, i32
  }
  func.func @transform_1(%arg0: i32, %arg1: i32) -> (i32, i32) {
    %c0_i32 = arith.constant 0 : i32
    %c0_i32_0 = arith.constant 0 : i32
    %c0_i32_1 = arith.constant 0 : i32
    return %c0_i32, %c0_i32_0 : i32, i32
  }
  func.func @transform_2(%arg0: i32, %arg1: i32) -> (i32, i32) {
    %c0_i32 = arith.constant 0 : i32
    %c0_i32_0 = arith.constant 0 : i32
    %c0_i32_1 = arith.constant 0 : i32
    return %c0_i32, %c0_i32_0 : i32, i32
  }
  func.func @transform_3(%arg0: i32, %arg1: i32) -> (i32, i32) {
    %c0_i32 = arith.constant 0 : i32
    %c0_i32_0 = arith.constant 0 : i32
    %c0_i32_1 = arith.constant 0 : i32
    return %c0_i32, %c0_i32_0 : i32, i32
  }
  func.func @transform_4(%arg0: i32, %arg1: i32) -> (i32, i32, i32) {
    %c0_i32 = arith.constant 0 : i32
    %c0_i32_0 = arith.constant 0 : i32
    %c0_i32_1 = arith.constant 0 : i32
    return %arg0, %c0_i32, %c0_i32_0 : i32, i32, i32
  }
  func.func @transform_5(%arg0: i32, %arg1: i32) -> (i32, i32, i32) {
    %c0_i32 = arith.constant 0 : i32
    %c0_i32_0 = arith.constant 0 : i32
    %c0_i32_1 = arith.constant 0 : i32
    return %arg0, %c0_i32, %c0_i32_0 : i32, i32, i32
  }
  func.func @transform_6(%arg0: i32, %arg1: i32) -> (i32, i32, i32) {
    %c0_i32 = arith.constant 0 : i32
    %c0_i32_0 = arith.constant 0 : i32
    %c0_i32_1 = arith.constant 0 : i32
    return %arg0, %c0_i32, %c0_i32_0 : i32, i32, i32
  }
}

</mosaic_0001>

<llo_original>
// kernel: tpu_custom_call.1
$region0: #{tpu_custom_call.1}
  #allocation0 [shape = 'u32[]', space=smem, size = 0x4, offset = 0x4, fixed_abs, tag = 'smem constant byte address 0x4 - core index']
  #allocation1 [shape = 'u32[144,128]{1,0:T(1,128)}', space=vmem, size = 0x12000, scoped, tag = 'internal scratch']
  #allocation2 [shape = 'f32[1,1]{1,0:T(1,128)}', space=vmem, size = 0x200, scoped, tag = 'scratch operand']
  #allocation3 [shape = 'f32[1,1]{1,0:T(1,128)}', space=vmem, size = 0x200, scoped, tag = 'scratch operand']
  #allocation4 [shape = 'f32[1,8]{1,0:T(1,128)}', space=vmem, size = 0x200, scoped, tag = 'scratch operand']
  %s0 = inlined_call_operand.vmem [shape: f32[16,8], index: 0, kind: input, shape index: {}]
  %s1 = inlined_call_operand.vmem [shape: f32[8,32], index: 1, kind: input, shape index: {}]
  %s2 = inlined_call_operand.vmem [shape: f32[1,32], index: 2, kind: input, shape index: {}]
  %s3 = inlined_call_operand.vmem [shape: f32[1,32], index: 3, kind: input, shape index: {}]
  %s4 = inlined_call_operand.hbm [shape: f32[1,1,1], index: 4, kind: output, shape index: {0}]
  %s5 = inlined_call_operand.hbm [shape: f32[1,1,1], index: 5, kind: output, shape index: {1}]
  %s6 = inlined_call_operand.hbm [shape: f32[1,1,8], index: 6, kind: output, shape index: {2}]
  %7 = xla_tuple %s4, %s5, %s6
  %s8 = sld [smem:[#allocation0]]
  $region58: #{tpu_custom_call.1} parent=0
    _
  %s10 = ssub.s32 1, %s8
  %s11 = scalar_select 0, %s10, %s8
  $region1: #{tpu_custom_call.1} parent=0
    #allocation5 [shape = 'u8[512]{0}', space=vmem, size = 0x400, scoped, tag = 'output window, operand 0, single buffered']
    #allocation6 [shape = 's32[1]{0}', space=sflag, size = 0x4, scoped, tag = 'scoped memory for tpu_custom_call.1']
    #allocation7 [shape = 'u8[512]{0}', space=vmem, size = 0x400, scoped, tag = 'output window, operand 1, single buffered']
    #allocation8 [shape = 's32[1]{0}', space=sflag, size = 0x4, scoped, tag = 'scoped memory for tpu_custom_call.1']
    #allocation9 [shape = 'u8[512]{0}', space=vmem, size = 0x400, scoped, tag = 'output window, operand 2, single buffered']
    %12 = vsyncpa [#allocation6], 0
    %13 = vsyncpa [#allocation8], 0
    // Predicated region
    $region2: #{tpu_custom_call.1} parent=1 // pred_check
      _
    $region3: #{tpu_custom_call.1} parent=1 // pred_check_branch
      %15 = sbr.rel (0) target = $region5
    $region4: #{tpu_custom_call.1} parent=1 // pred_region
      %s16 = sadd.s32 0, 0
      %p17 = scmp.lt.s32.totalorder %s16, 0
      %s18 = scalar_select %p17, %s16, 0
      %s19 = smul.u32 2, %s18
      %p20 = scmp.lt.s32.totalorder %s19, 1
      %s21 = scalar_select %p20, %s19, 1
      %s22 = smul.addr %s21, 8
      %s23 = scalar_lea.vmem %s0, %s22
      %s24 = sadd.s32 0, 0
      %p25 = scmp.lt.s32.totalorder %s24, 0
      %s26 = scalar_select %p25, %s24, 0
      %s27 = smul.u32 2, %s26
    $region5: #{tpu_custom_call.1} parent=1 // pred_fallthru
      _
    // Predicated region
    $region6: #{tpu_custom_call.1} parent=1 // pred_check
      _
    $region7: #{tpu_custom_call.1} parent=1 // pred_check_branch
      %29 = sbr.rel (0) target = $region9
    $region8: #{tpu_custom_call.1} parent=1 // pred_region
      _
    $region9: #{tpu_custom_call.1} parent=1 // pred_fallthru
      _
    // Predicated region
    $region10: #{tpu_custom_call.1} parent=1 // pred_check
      _
    $region11: #{tpu_custom_call.1} parent=1 // pred_check_branch
      %31 = sbr.rel (0) target = $region13
    $region12: #{tpu_custom_call.1} parent=1 // pred_region
      _
    $region13: #{tpu_custom_call.1} parent=1 // pred_fallthru
      _
    // Predicated region
    $region14: #{tpu_custom_call.1} parent=1 // pred_check
      _
    $region15: #{tpu_custom_call.1} parent=1 // pred_check_branch
      %33 = sbr.rel (0) target = $region17
    $region16: #{tpu_custom_call.1} parent=1 // pred_region
      _
    $region17: #{tpu_custom_call.1} parent=1 // pred_fallthru
      _
    %s34 = sadd.s32 0, 0
    %p35 = scmp.lt.s32.totalorder %s34, 0
    %s36 = scalar_select %p35, %s34, 0
    %s37 = smul.u32 2, %s36
    %p38 = scmp.lt.s32.totalorder %s37, 1
    %s39 = scalar_select %p38, %s37, 1
    %s40 = smul.addr %s39, 8
    %s41 = scalar_lea.vmem %s0, %s40
    %s42 = sadd.s32 0, 0
    %p43 = scmp.lt.s32.totalorder %s42, 0
    %s44 = scalar_select %p43, %s42, 0
    %s45 = smul.u32 2, %s44
    %p46 = scmp.lt.s32.totalorder %s45, 1
    %s47 = scalar_select %p46, %s45, 1
    %s48 = smul.addr %s47, 8
    %s49 = scalar_lea.vmem %s0, %s48
    %s50 = sadd.s32 0, 0
    %p51 = scmp.lt.s32.totalorder %s50, 0
    %s52 = scalar_select %p51, %s50, 0
    %s53 = smul.u32 2, %s52
    %p54 = scmp.eq.s32.totalorder 0, 0
    // Predicated region
    $region18: #{tpu_custom_call.1} parent=1 // pred_check
      %p55 = pneg %p54
    $region19: #{tpu_custom_call.1} parent=1 // pred_check_branch
      %57 = sbr.rel (%p55) target = $region21
    $region20: #{tpu_custom_call.1} parent=1 // pred_region
      %vm58 = vcmask 0
      %59 = vst.msk [vmem:[#allocation2] sm:$0x1] %vm58, -inf
      %60 = vst.msk [vmem:[#allocation3] sm:$0x1] %vm58, 0.0
      %vm61 = vcmask 57344
      %62 = vst.msk [vmem:[#allocation4] sm:$0x1] %vm61, 0.0
    $region21: #{tpu_custom_call.1} parent=1 // pred_fallthru
      _
    %s63 = sadd.s32 0, 0
    %s64 = sadd.s32 %s63, 1
    %s65 = smul.u32 %s64, 16
    %p66 = scmp.le.s32.totalorder %s65, 16
    // Predicated region
    $region22: #{tpu_custom_call.1} parent=1 // pred_check
      %p67 = pneg %p66
    $region23: #{tpu_custom_call.1} parent=1 // pred_check_branch
      %69 = sbr.rel (%p67) target = $region25
    $region24: #{tpu_custom_call.1} parent=1 // pred_region
      %v70 = vld [vmem:[%s49] sm:$0xff]
      %v71 = vld [vmem:[%s49 + $0x8] sm:$0xff]
      %v72 = vld [vmem:[%s1] sm:$0xff]
      %v73 = vld [vmem:[%s2] sm:$0x1]
      %v75 = vlaneseq
      %v76 = vshrl.u32 %v75, 7
      %v77 = vsub.s32 0, %v76
      %v78 = vrot.slane %v73, %v77
      %vm80 = vcmask 64512
      %v82 = vsel %vm80, %v70, 0
      %v85 = vsel %vm80, %v71, 0
      %87 = vmatprep.subr.mxu0 0.0
      %88 = vmatpush1.msra.mxu0 %v72
      %89 = vmatprep.subr.mxu0 0.0
      %90 = vmatpush1.msra.mxu0 0.0
      %91 = vmatprep.subr.mxu0 0.0
      %92 = vmatpush1.msra.mxu0 0.0
      %93 = vmatprep.subr.mxu0 0.0
      %94 = vmatpush1.msra.mxu0 0.0
      %95 = vmatprep.subr.mxu0 0.0
      %96 = vmatpush1.msra.mxu0 0.0
      %97 = vmatprep.subr.mxu0 0.0
      %98 = vmatpush1.msra.mxu0 0.0
      %99 = vmatprep.subr.mxu0 0.0
      %100 = vmatpush1.msra.mxu0 0.0
      %101 = vmatprep.subr.mxu0 0.0
      %102 = vmatpush1.msra.mxu0 0.0
      %103 = vmatprep.subr.mxu0 0.0
      %104 = vmatpush1.msra.mxu0 0.0
      %105 = vmatprep.subr.mxu0 0.0
      %106 = vmatpush1.msra.mxu0 0.0
      %107 = vmatprep.subr.mxu0 0.0
      %108 = vmatpush1.msra.mxu0 0.0
      %109 = vmatprep.subr.mxu0 0.0
      %110 = vmatpush1.msra.mxu0 0.0
      %111 = vmatprep.subr.mxu0 0.0
      %112 = vmatpush1.msra.mxu0 0.0
      %113 = vmatprep.subr.mxu0 0.0
      %114 = vmatpush1.msra.mxu0 0.0
      %115 = vmatprep.subr.mxu0 0.0
      %116 = vmatpush1.msra.mxu0 0.0
      %117 = vmatprep.subr.mxu0 0.0
      %118 = vmatpush1.msra.mxu0 0.0
      %119 = vmatprep.subr.mxu0 0.0
      %120 = vmatpush1.msra.mxu0 0.0
      %121 = vmatprep.subr.mxu0 0.0
      %122 = vmatpush1.msra.mxu0 0.0
      %123 = vmatprep.subr.mxu0 0.0
      %124 = vmatpush1.msra.mxu0 0.0
      %125 = vmatprep.subr.mxu0 0.0
      %126 = vmatpush1.msra.mxu0 0.0
      %127 = vmatprep.subr.mxu0 0.0
      %128 = vmatpush1.msra.mxu0 0.0
      %129 = vmatprep.subr.mxu0 0.0
      %130 = vmatpush1.msra.mxu0 0.0
      %131 = vmatprep.subr.mxu0 0.0
      %132 = vmatpush1.msra.mxu0 0.0
      %133 = vmatprep.subr.mxu0 0.0
      %134 = vmatpush1.msra.mxu0 0.0
      %135 = vmatprep.subr.mxu0 0.0
      %136 = vmatpush1.msra.mxu0 0.0
      %137 = vmatprep.subr.mxu0 0.0
      %138 = vmatpush1.msra.mxu0 0.0
      %139 = vmatprep.subr.mxu0 0.0
      %140 = vmatpush1.msra.mxu0 0.0
      %141 = vmatprep.subr.mxu0 0.0
      %142 = vmatpush1.msra.mxu0 0.0
      %143 = vmatprep.subr.mxu0 0.0
      %144 = vmatpush1.msra.mxu0 0.0
      %145 = vmatprep.subr.mxu0 0.0
      %146 = vmatpush1.msra.mxu0 0.0
      %147 = vmatprep.subr.mxu0 0.0
      %148 = vmatpush1.msra.mxu0 0.0
      %149 = vmatprep.subr.mxu0 0.0
      %150 = vmatpush1.msra.mxu0 0.0
      %151 = vmatprep.mubr.f32.mxu0 0.0
      %152 = vmatmul.mubr.f32.gmra.mrb[0].mxu0 %v82
      %v153 = vpop.f32.mrb[0].mxu0
      %v154 = vadd.f32 %v78, %v153
      %v155 = vpop.f32.mrb[0].mxu0
      %156 = vmatprep.mubr.f32.mxu0 0.0
      %157 = vmatmul.mubr.f32.gmra.mrb[0].mxu0 %v85
      %v158 = vpop.f32.mrb[0].mxu0
      %v159 = vadd.f32 %v78, %v158
      %v160 = vpop.f32.mrb[0].mxu0
      %161 = vdwg.mxu0
      %v162 = vtanh.pop %v154
      %v163 = vtanh.pop %v159
      %v164 = vld [vmem:[%s3] sm:$0x1]
      %v166 = vlaneseq
      %v167 = vshrl.u32 %v166, 7
      %v168 = vsub.s32 0, %v167
      %v169 = vrot.slane %v164, %v168
      %v171 = vmul.f32 %v162, %v169
      %v172 = vmul.f32 %v163, %v169
      %vm173 = vcmask 261120
      %v174 = vsel %vm173, %v171, 0.0
      %175 = vadd.xlane.f32.xlu0 %v174
      %v176 = vpop.xlane.xlu0 %175
      %v177 = vsel %vm173, %v172, 0.0
      %178 = vadd.xlane.f32.xlu0 %v177
      %v179 = vpop.xlane.xlu0 %178
      %v180 = vld [vmem:[#allocation2] sm:$0x1]
      %v181 = vmax.f32 %v176, %v179
      %v182 = vrot.slane %v181, 4
      %v183 = vmax.f32 %v181, %v182
      %v184 = vrot.slane %v183, 2
      %v185 = vmax.f32 %v183, %v184
      %v186 = vrot.slane %v185, 1
      %v187 = vmax.f32 %v185, %v186
      %v188 = vmax.f32 %v180, %v187
      %v189 = vsub.f32 %v180, %v188
      %v190 = vmul.f32 %v189, 1.442695
      %v191 = vpow.pop %v190
      %v193 = vlaneseq
      %v194 = vshrl.u32 %v193, 7
      %v195 = vsub.s32 0, %v194
      %v196 = vrot.slane %v188, %v195
      %v198 = vsub.f32 %v176, %v196
      %v199 = vsub.f32 %v179, %v196
      %v200 = vmul.f32 %v198, 1.442695
      %v201 = vpow.pop %v200
      %v202 = vmul.f32 %v199, 1.442695
      %v203 = vpow.pop %v202
      %v204 = vld [vmem:[#allocation3] sm:$0x1]
      %v205 = vmul.f32 %v191, %v204
      %vm206 = vcmask 7168
      %v207 = vsel %vm206, %v201, 0.0
      %v208 = vsel %vm206, %v203, 0.0
      %v209 = vadd.f32 %v207, %v208
      %v210 = vrot.slane %v209, 4
      %v211 = vadd.f32 %v209, %v210
      %v212 = vrot.slane %v211, 2
      %v213 = vadd.f32 %v211, %v212
      %v214 = vrot.slane %v213, 1
      %v215 = vadd.f32 %v213, %v214
      %v216 = vadd.f32 %v205, %v215
      %vm217 = vcmask 0
      %218 = vst.msk [vmem:[#allocation3] sm:$0x1] %vm217, %v216
      %v219 = vld [vmem:[#allocation4] sm:$0x1]
      %221 = vset.pattern.permute.xlu0 0
      %222 = vperm.xlu0 %221, %v191
      %v223 = vpop.permute.xlu0 %222
      %v225 = vlaneseq
      %v226 = vshrl.u32 %v225, 7
      %v227 = vsub.s32 0, %v226
      %v228 = vrot.slane %v223, %v227
      %v229 = vmul.f32 %v228, %v219
      %230 = vxpose.xlu0.b32.start [1/16] %v201, 128
      %231 = vxpose.xlu0.b32.cont [2/16] %v203, 128
      %232 = vxpose.xlu0.b32.cont [3/16] 0.0, 128
      %233 = vxpose.xlu0.b32.cont [4/16] 0.0, 128
      %234 = vxpose.xlu0.b32.cont [5/16] 0.0, 128
      %235 = vxpose.xlu0.b32.cont [6/16] 0.0, 128
      %236 = vxpose.xlu0.b32.cont [7/16] 0.0, 128
      %237 = vxpose.xlu0.b32.cont [8/16] 0.0, 128
      %238 = vxpose.xlu0.b32.cont [9/16] 0.0, 128
      %239 = vxpose.xlu0.b32.cont [10/16] 0.0, 128
      %240 = vxpose.xlu0.b32.cont [11/16] 0.0, 128
      %241 = vxpose.xlu0.b32.cont [12/16] 0.0, 128
      %242 = vxpose.xlu0.b32.cont [13/16] 0.0, 128
      %243 = vxpose.xlu0.b32.cont [14/16] 0.0, 128
      %244 = vxpose.xlu0.b32.cont [15/16] 0.0, 128
      %245 = vxpose.xlu0.b32.end [16/16] 0.0, 128
      %v246 = vpop.trf.xlu0
      %v247 = vpop.trf.xlu0
      %v248 = vpop.trf.xlu0
      %v249 = vpop.trf.xlu0
      %v250 = vpop.trf.xlu0
      %v251 = vpop.trf.xlu0
      %v252 = vpop.trf.xlu0
      %v253 = vpop.trf.xlu0
      %v254 = vpop.trf.xlu0
      %v255 = vpop.trf.xlu0
      %v256 = vpop.trf.xlu0
      %v257 = vpop.trf.xlu0
      %v258 = vpop.trf.xlu0
      %v259 = vpop.trf.xlu0
      %v260 = vpop.trf.xlu0
      %v261 = vpop.trf.xlu0
      %vm262 = vcmask 130048
      %v264 = vsel %vm262, %v246, 0
      %266 = vmatprep.subr.mxu0 0.0
      %267 = vmatpush1.msra.mxu0 %v70
      %268 = vmatprep.subr.mxu0 0.0
      %269 = vmatpush1.msra.mxu0 %v71
      %270 = vmatprep.subr.mxu0 0.0
      %271 = vmatpush1.msra.mxu0 0.0
      %272 = vmatprep.subr.mxu0 0.0
      %273 = vmatpush1.msra.mxu0 0.0
      %274 = vmatprep.subr.mxu0 0.0
      %275 = vmatpush1.msra.mxu0 0.0
      %276 = vmatprep.subr.mxu0 0.0
      %277 = vmatpush1.msra.mxu0 0.0
      %278 = vmatprep.subr.mxu0 0.0
      %279 = vmatpush1.msra.mxu0 0.0
      %280 = vmatprep.subr.mxu0 0.0
      %281 = vmatpush1.msra.mxu0 0.0
      %282 = vmatprep.subr.mxu0 0.0
      %283 = vmatpush1.msra.mxu0 0.0
      %284 = vmatprep.subr.mxu0 0.0
      %285 = vmatpush1.msra.mxu0 0.0
      %286 = vmatprep.subr.mxu0 0.0
      %287 = vmatpush1.msra.mxu0 0.0
      %288 = vmatprep.subr.mxu0 0.0
      %289 = vmatpush1.msra.mxu0 0.0
      %290 = vmatprep.subr.mxu0 0.0
      %291 = vmatpush1.msra.mxu0 0.0
      %292 = vmatprep.subr.mxu0 0.0
      %293 = vmatpush1.msra.mxu0 0.0
      %294 = vmatprep.subr.mxu0 0.0
      %295 = vmatpush1.msra.mxu0 0.0
      %296 = vmatprep.subr.mxu0 0.0
      %297 = vmatpush1.msra.mxu0 0.0
      %298 = vmatprep.subr.mxu0 0.0
      %299 = vmatpush1.msra.mxu0 0.0
      %300 = vmatprep.subr.mxu0 0.0
      %301 = vmatpush1.msra.mxu0 0.0
      %302 = vmatprep.subr.mxu0 0.0
      %303 = vmatpush1.msra.mxu0 0.0
      %304 = vmatprep.subr.mxu0 0.0
      %305 = vmatpush1.msra.mxu0 0.0
      %306 = vmatprep.subr.mxu0 0.0
      %307 = vmatpush1.msra.mxu0 0.0
      %308 = vmatprep.subr.mxu0 0.0
      %309 = vmatpush1.msra.mxu0 0.0
      %310 = vmatprep.subr.mxu0 0.0
      %311 = vmatpush1.msra.mxu0 0.0
      %312 = vmatprep.subr.mxu0 0.0
      %313 = vmatpush1.msra.mxu0 0.0
      %314 = vmatprep.subr.mxu0 0.0
      %315 = vmatpush1.msra.mxu0 0.0
      %316 = vmatprep.subr.mxu0 0.0
      %317 = vmatpush1.msra.mxu0 0.0
      %318 = vmatprep.subr.mxu0 0.0
      %319 = vmatpush1.msra.mxu0 0.0
      %320 = vmatprep.subr.mxu0 0.0
      %321 = vmatpush1.msra.mxu0 0.0
      %322 = vmatprep.subr.mxu0 0.0
      %323 = vmatpush1.msra.mxu0 0.0
      %324 = vmatprep.subr.mxu0 0.0
      %325 = vmatpush1.msra.mxu0 0.0
      %326 = vmatprep.subr.mxu0 0.0
      %327 = vmatpush1.msra.mxu0 0.0
      %328 = vmatprep.subr.mxu0 0.0
      %329 = vmatpush1.msra.mxu0 0.0
      %330 = vmatprep.mubr.f32.mxu0 0.0
      %331 = vmatmul.mubr.f32.gmra.mrb[0].mxu0 %v264
      %v332 = vpop.f32.mrb[0].mxu0
      %v333 = vadd.f32 0.0, %v332
      %v334 = vpop.f32.mrb[0].mxu0
      %335 = vdwg.mxu0
      %v336 = vadd.f32 %v229, %v333
      %vm337 = vcmask 57344
      %338 = vst.msk [vmem:[#allocation4] sm:$0x1] %vm337, %v336
      %339 = vst.msk [vmem:[#allocation2] sm:$0x1] %vm217, %v188
    $region25: #{tpu_custom_call.1} parent=1 // pred_fallthru
      _
    %p340 = scmp.gt.s32.totalorder %s65, 16
    // Predicated region
    $region26: #{tpu_custom_call.1} parent=1 // pred_check
      %p341 = pneg %p340
    $region27: #{tpu_custom_call.1} parent=1 // pred_check_branch
      %343 = sbr.rel (%p341) target = $region29
    $region28: #{tpu_custom_call.1} parent=1 // pred_region
      %s344 = smul.u32 %s63, 16
      %v345 = vlaneseq
      %v346 = vshrl.u32 %v345, 7
      %v347 = vadd.s32 %v346, 8
      %v348 = vstv %s344
      %v349 = vadd.s32 %v348, %v346
      %v350 = vadd.s32 %v348, %v347
      %vm351 = vcmp.lt.s32.totalorder %v349, 16
      %vm352 = vcmp.lt.s32.totalorder %v350, 16
      %v353 = vld [vmem:[%s49] sm:$0xff]
      %v354 = vld [vmem:[%s49 + $0x8] sm:$0xff]
      %v355 = vsel %vm351, 1, 0
      %v356 = vsel %vm352, 1, 0
      %vm357 = vcmp.eq.s32.totalorder %v355, 1
      %vm358 = vcmp.eq.s32.totalorder %v356, 1
      %v359 = vsel %vm357, %v353, 0.0
      %v360 = vsel %vm358, %v354, 0.0
      %v361 = vld [vmem:[%s1] sm:$0xff]
      %v362 = vld [vmem:[%s2] sm:$0x1]
      %v364 = vlaneseq
      %v365 = vshrl.u32 %v364, 7
      %v366 = vsub.s32 0, %v365
      %v367 = vrot.slane %v362, %v366
      %vm369 = vcmask 64512
      %v371 = vsel %vm369, %v359, 0
      %v374 = vsel %vm369, %v360, 0
      %376 = vmatprep.subr.mxu0 0.0
      %377 = vmatpush1.msra.mxu0 %v361
      %378 = vmatprep.subr.mxu0 0.0
      %379 = vmatpush1.msra.mxu0 0.0
      %380 = vmatprep.subr.mxu0 0.0
      %381 = vmatpush1.msra.mxu0 0.0
      %382 = vmatprep.subr.mxu0 0.0
      %383 = vmatpush1.msra.mxu0 0.0
      %384 = vmatprep.subr.mxu0 0.0
      %385 = vmatpush1.msra.mxu0 0.0
      %386 = vmatprep.subr.mxu0 0.0
      %387 = vmatpush1.msra.mxu0 0.0
      %388 = vmatprep.subr.mxu0 0.0
      %389 = vmatpush1.msra.mxu0 0.0
      %390 = vmatprep.subr.mxu0 0.0
      %391 = vmatpush1.msra.mxu0 0.0
      %392 = vmatprep.subr.mxu0 0.0
      %393 = vmatpush1.msra.mxu0 0.0
      %394 = vmatprep.subr.mxu0 0.0
      %395 = vmatpush1.msra.mxu0 0.0
      %396 = vmatprep.subr.mxu0 0.0
      %397 = vmatpush1.msra.mxu0 0.0
      %398 = vmatprep.subr.mxu0 0.0
      %399 = vmatpush1.msra.mxu0 0.0
      %400 = vmatprep.subr.mxu0 0.0
      %401 = vmatpush1.msra.mxu0 0.0
      %402 = vmatprep.subr.mxu0 0.0
      %403 = vmatpush1.msra.mxu0 0.0
      %404 = vmatprep.subr.mxu0 0.0
      %405 = vmatpush1.msra.mxu0 0.0
      %406 = vmatprep.subr.mxu0 0.0
      %407 = vmatpush1.msra.mxu0 0.0
      %408 = vmatprep.subr.mxu0 0.0
      %409 = vmatpush1.msra.mxu0 0.0
      %410 = vmatprep.subr.mxu0 0.0
      %411 = vmatpush1.msra.mxu0 0.0
      %412 = vmatprep.subr.mxu0 0.0
      %413 = vmatpush1.msra.mxu0 0.0
      %414 = vmatprep.subr.mxu0 0.0
      %415 = vmatpush1.msra.mxu0 0.0
      %416 = vmatprep.subr.mxu0 0.0
      %417 = vmatpush1.msra.mxu0 0.0
      %418 = vmatprep.subr.mxu0 0.0
      %419 = vmatpush1.msra.mxu0 0.0
      %420 = vmatprep.subr.mxu0 0.0
      %421 = vmatpush1.msra.mxu0 0.0
      %422 = vmatprep.subr.mxu0 0.0
      %423 = vmatpush1.msra.mxu0 0.0
      %424 = vmatprep.subr.mxu0 0.0
      %425 = vmatpush1.msra.mxu0 0.0
      %426 = vmatprep.subr.mxu0 0.0
      %427 = vmatpush1.msra.mxu0 0.0
      %428 = vmatprep.subr.mxu0 0.0
      %429 = vmatpush1.msra.mxu0 0.0
      %430 = vmatprep.subr.mxu0 0.0
      %431 = vmatpush1.msra.mxu0 0.0
      %432 = vmatprep.subr.mxu0 0.0
      %433 = vmatpush1.msra.mxu0 0.0
      %434 = vmatprep.subr.mxu0 0.0
      %435 = vmatpush1.msra.mxu0 0.0
      %436 = vmatprep.subr.mxu0 0.0
      %437 = vmatpush1.msra.mxu0 0.0
      %438 = vmatprep.subr.mxu0 0.0
      %439 = vmatpush1.msra.mxu0 0.0
      %440 = vmatprep.mubr.f32.mxu0 0.0
      %441 = vmatmul.mubr.f32.gmra.mrb[0].mxu0 %v371
      %v442 = vpop.f32.mrb[0].mxu0
      %v443 = vadd.f32 %v367, %v442
      %v444 = vpop.f32.mrb[0].mxu0
      %445 = vmatprep.mubr.f32.mxu0 0.0
      %446 = vmatmul.mubr.f32.gmra.mrb[0].mxu0 %v374
      %v447 = vpop.f32.mrb[0].mxu0
      %v448 = vadd.f32 %v367, %v447
      %v449 = vpop.f32.mrb[0].mxu0
      %450 = vdwg.mxu0
      %v451 = vtanh.pop %v443
      %v452 = vtanh.pop %v448
      %v453 = vld [vmem:[%s3] sm:$0x1]
      %v455 = vlaneseq
      %v456 = vshrl.u32 %v455, 7
      %v457 = vsub.s32 0, %v456
      %v458 = vrot.slane %v453, %v457
      %v460 = vmul.f32 %v451, %v458
      %v461 = vmul.f32 %v452, %v458
      %vm462 = vcmask 261120
      %v463 = vsel %vm462, %v460, 0.0
      %464 = vadd.xlane.f32.xlu0 %v463
      %v465 = vpop.xlane.xlu0 %464
      %v466 = vsel %vm462, %v461, 0.0
      %467 = vadd.xlane.f32.xlu0 %v466
      %v468 = vpop.xlane.xlu0 %467
      %v469 = vsel %vm351, %v465, -inf
      %v470 = vsel %vm352, %v468, -inf
      %v471 = vld [vmem:[#allocation2] sm:$0x1]
      %v472 = vmax.f32 %v469, %v470
      %v473 = vrot.slane %v472, 4
      %v474 = vmax.f32 %v472, %v473
      %v475 = vrot.slane %v474, 2
      %v476 = vmax.f32 %v474, %v475
      %v477 = vrot.slane %v476, 1
      %v478 = vmax.f32 %v476, %v477
      %v479 = vmax.f32 %v471, %v478
      %vm480 = vcmp.eq.f32.partialorder %v479, -inf
      %v481 = vsel %vm480, 0.0, %v479
      %v482 = vsub.f32 %v471, %v481
      %v483 = vmul.f32 %v482, 1.442695
      %v484 = vpow.pop %v483
      %v486 = vlaneseq
      %v487 = vshrl.u32 %v486, 7
      %v488 = vsub.s32 0, %v487
      %v489 = vrot.slane %v481, %v488
      %v491 = vsub.f32 %v469, %v489
      %v492 = vsub.f32 %v470, %v489
      %v493 = vmul.f32 %v491, 1.442695
      %v494 = vpow.pop %v493
      %v495 = vmul.f32 %v492, 1.442695
      %v496 = vpow.pop %v495
      %v497 = vld [vmem:[#allocation3] sm:$0x1]
      %v498 = vmul.f32 %v484, %v497
      %vm499 = vcmask 7168
      %v500 = vsel %vm499, %v494, 0.0
      %v501 = vsel %vm499, %v496, 0.0
      %v502 = vadd.f32 %v500, %v501
      %v503 = vrot.slane %v502, 4
      %v504 = vadd.f32 %v502, %v503
      %v505 = vrot.slane %v504, 2
      %v506 = vadd.f32 %v504, %v505
      %v507 = vrot.slane %v506, 1
      %v508 = vadd.f32 %v506, %v507
      %v509 = vadd.f32 %v498, %v508
      %vm510 = vcmask 0
      %511 = vst.msk [vmem:[#allocation3] sm:$0x1] %vm510, %v509
      %v512 = vld [vmem:[#allocation4] sm:$0x1]
      %514 = vset.pattern.permute.xlu0 0
      %515 = vperm.xlu0 %514, %v484
      %v516 = vpop.permute.xlu0 %515
      %v518 = vlaneseq
      %v519 = vshrl.u32 %v518, 7
      %v520 = vsub.s32 0, %v519
      %v521 = vrot.slane %v516, %v520
      %v522 = vmul.f32 %v521, %v512
      %523 = vxpose.xlu0.b32.start [1/16] %v494, 128
      %524 = vxpose.xlu0.b32.cont [2/16] %v496, 128
      %525 = vxpose.xlu0.b32.cont [3/16] 0.0, 128
      %526 = vxpose.xlu0.b32.cont [4/16] 0.0, 128
      %527 = vxpose.xlu0.b32.cont [5/16] 0.0, 128
      %528 = vxpose.xlu0.b32.cont [6/16] 0.0, 128
      %529 = vxpose.xlu0.b32.cont [7/16] 0.0, 128
      %530 = vxpose.xlu0.b32.cont [8/16] 0.0, 128
      %531 = vxpose.xlu0.b32.cont [9/16] 0.0, 128
      %532 = vxpose.xlu0.b32.cont [10/16] 0.0, 128
      %533 = vxpose.xlu0.b32.cont [11/16] 0.0, 128
      %534 = vxpose.xlu0.b32.cont [12/16] 0.0, 128
      %535 = vxpose.xlu0.b32.cont [13/16] 0.0, 128
      %536 = vxpose.xlu0.b32.cont [14/16] 0.0, 128
      %537 = vxpose.xlu0.b32.cont [15/16] 0.0, 128
      %538 = vxpose.xlu0.b32.end [16/16] 0.0, 128
      %v539 = vpop.trf.xlu0
      %v540 = vpop.trf.xlu0
      %v541 = vpop.trf.xlu0
      %v542 = vpop.trf.xlu0
      %v543 = vpop.trf.xlu0
      %v544 = vpop.trf.xlu0
      %v545 = vpop.trf.xlu0
      %v546 = vpop.trf.xlu0
      %v547 = vpop.trf.xlu0
      %v548 = vpop.trf.xlu0
      %v549 = vpop.trf.xlu0
      %v550 = vpop.trf.xlu0
      %v551 = vpop.trf.xlu0
      %v552 = vpop.trf.xlu0
      %v553 = vpop.trf.xlu0
      %v554 = vpop.trf.xlu0
      %vm555 = vcmask 130048
      %v557 = vsel %vm555, %v539, 0
      %559 = vmatprep.subr.mxu0 0.0
      %560 = vmatpush1.msra.mxu0 %v359
      %561 = vmatprep.subr.mxu0 0.0
      %562 = vmatpush1.msra.mxu0 %v360
      %563 = vmatprep.subr.mxu0 0.0
      %564 = vmatpush1.msra.mxu0 0.0
      %565 = vmatprep.subr.mxu0 0.0
      %566 = vmatpush1.msra.mxu0 0.0
      %567 = vmatprep.subr.mxu0 0.0
      %568 = vmatpush1.msra.mxu0 0.0
      %569 = vmatprep.subr.mxu0 0.0
      %570 = vmatpush1.msra.mxu0 0.0
      %571 = vmatprep.subr.mxu0 0.0
      %572 = vmatpush1.msra.mxu0 0.0
      %573 = vmatprep.subr.mxu0 0.0
      %574 = vmatpush1.msra.mxu0 0.0
      %575 = vmatprep.subr.mxu0 0.0
      %576 = vmatpush1.msra.mxu0 0.0
      %577 = vmatprep.subr.mxu0 0.0
      %578 = vmatpush1.msra.mxu0 0.0
      %579 = vmatprep.subr.mxu0 0.0
      %580 = vmatpush1.msra.mxu0 0.0
      %581 = vmatprep.subr.mxu0 0.0
      %582 = vmatpush1.msra.mxu0 0.0
      %583 = vmatprep.subr.mxu0 0.0
      %584 = vmatpush1.msra.mxu0 0.0
      %585 = vmatprep.subr.mxu0 0.0
      %586 = vmatpush1.msra.mxu0 0.0
      %587 = vmatprep.subr.mxu0 0.0
      %588 = vmatpush1.msra.mxu0 0.0
      %589 = vmatprep.subr.mxu0 0.0
      %590 = vmatpush1.msra.mxu0 0.0
      %591 = vmatprep.subr.mxu0 0.0
      %592 = vmatpush1.msra.mxu0 0.0
      %593 = vmatprep.subr.mxu0 0.0
      %594 = vmatpush1.msra.mxu0 0.0
      %595 = vmatprep.subr.mxu0 0.0
      %596 = vmatpush1.msra.mxu0 0.0
      %597 = vmatprep.subr.mxu0 0.0
      %598 = vmatpush1.msra.mxu0 0.0
      %599 = vmatprep.subr.mxu0 0.0
      %600 = vmatpush1.msra.mxu0 0.0
      %601 = vmatprep.subr.mxu0 0.0
      %602 = vmatpush1.msra.mxu0 0.0
      %603 = vmatprep.subr.mxu0 0.0
      %604 = vmatpush1.msra.mxu0 0.0
      %605 = vmatprep.subr.mxu0 0.0
      %606 = vmatpush1.msra.mxu0 0.0
      %607 = vmatprep.subr.mxu0 0.0
      %608 = vmatpush1.msra.mxu0 0.0
      %609 = vmatprep.subr.mxu0 0.0
      %610 = vmatpush1.msra.mxu0 0.0
      %611 = vmatprep.subr.mxu0 0.0
      %612 = vmatpush1.msra.mxu0 0.0
      %613 = vmatprep.subr.mxu0 0.0
      %614 = vmatpush1.msra.mxu0 0.0
      %615 = vmatprep.subr.mxu0 0.0
      %616 = vmatpush1.msra.mxu0 0.0
      %617 = vmatprep.subr.mxu0 0.0
      %618 = vmatpush1.msra.mxu0 0.0
      %619 = vmatprep.subr.mxu0 0.0
      %620 = vmatpush1.msra.mxu0 0.0
      %621 = vmatprep.subr.mxu0 0.0
      %622 = vmatpush1.msra.mxu0 0.0
      %623 = vmatprep.mubr.f32.mxu0 0.0
      %624 = vmatmul.mubr.f32.gmra.mrb[0].mxu0 %v557
      %v625 = vpop.f32.mrb[0].mxu0
      %v626 = vadd.f32 0.0, %v625
      %v627 = vpop.f32.mrb[0].mxu0
      %628 = vdwg.mxu0
      %v629 = vadd.f32 %v522, %v626
      %vm630 = vcmask 57344
      %631 = vst.msk [vmem:[#allocation4] sm:$0x1] %vm630, %v629
      %632 = vst.msk [vmem:[#allocation2] sm:$0x1] %vm510, %v479
    $region29: #{tpu_custom_call.1} parent=1 // pred_fallthru
      _
    // Predicated region
    $region30: #{tpu_custom_call.1} parent=1 // pred_check
      %p633 = pneg %p54
    $region31: #{tpu_custom_call.1} parent=1 // pred_check_branch
      %635 = sbr.rel (%p633) target = $region33
    $region32: #{tpu_custom_call.1} parent=1 // pred_region
      %v636 = vld [vmem:[#allocation2] sm:$0x1]
      %vm637 = vcmask 0
      %638 = vst.msk [vmem:[#allocation5] sm:$0x1] %vm637, %v636
      %v639 = vld [vmem:[#allocation3] sm:$0x1]
      %640 = vst.msk [vmem:[#allocation7] sm:$0x1] %vm637, %v639
      %v641 = vld [vmem:[#allocation4] sm:$0x1]
      %vm642 = vcmask 57344
      %643 = vst.msk [vmem:[#allocation9] sm:$0x1] %vm642, %v641
    $region33: #{tpu_custom_call.1} parent=1 // pred_fallthru
      _
    // Predicated region
    $region34: #{tpu_custom_call.1} parent=1 // pred_check
      _
    $region35: #{tpu_custom_call.1} parent=1 // pred_check_branch
      %645 = sbr.rel (0) target = $region37
    $region36: #{tpu_custom_call.1} parent=1 // pred_region
      %s647 = ssub.s32 16, 16
      %648 = vsyncadd [#allocation6], %s647
      %s650 = sshll.u32 [#allocation5], 4
      %s651 = int_to_ptr.vmem [resolvable:$true] %s650
      %653 = dma.vmem_to_hbm [thread:$0]  %s651, 16, %s4, [#allocation6]
    $region37: #{tpu_custom_call.1} parent=1 // pred_fallthru
      _
    // Predicated region
    $region38: #{tpu_custom_call.1} parent=1 // pred_check
      _
    $region39: #{tpu_custom_call.1} parent=1 // pred_check_branch
      %655 = sbr.rel (0) target = $region41
    $region40: #{tpu_custom_call.1} parent=1 // pred_region
      %s657 = ssub.s32 16, 16
      %658 = vsyncadd [#allocation8], %s657
      %s660 = sshll.u32 [#allocation7], 4
      %s661 = int_to_ptr.vmem [resolvable:$true] %s660
      %663 = dma.vmem_to_hbm [thread:$0]  %s661, 16, %s5, [#allocation8]
    $region41: #{tpu_custom_call.1} parent=1 // pred_fallthru
      _
    // Predicated region
    $region42: #{tpu_custom_call.1} parent=1 // pred_check
      _
    $region43: #{tpu_custom_call.1} parent=1 // pred_check_branch
      %665 = sbr.rel (0) target = $region45
    $region44: #{tpu_custom_call.1} parent=1 // pred_region
      %s667 = ssub.s32 16, 16
      %668 = vsyncadd [#allocation8], %s667
      %s670 = sshll.u32 [#allocation9], 4
      %s671 = int_to_ptr.vmem [resolvable:$true] %s670
      %673 = dma.vmem_to_hbm [thread:$0]  %s671, 16, %s6, [#allocation8]
    $region45: #{tpu_custom_call.1} parent=1 // pred_fallthru
      _
    // Predicated region
    $region46: #{tpu_custom_call.1} parent=1 // pred_check
      _
    $region47: #{tpu_custom_call.1} parent=1 // pred_check_branch
      %675 = sbr.rel (0) target = $region49
    $region48: #{tpu_custom_call.1} parent=1 // pred_region
      %676 = dma.done [#allocation6], 16
    $region49: #{tpu_custom_call.1} parent=1 // pred_fallthru
      _
    // Predicated region
    $region50: #{tpu_custom_call.1} parent=1 // pred_check
      _
    $region51: #{tpu_custom_call.1} parent=1 // pred_check_branch
      %678 = sbr.rel (0) target = $region53
    $region52: #{tpu_custom_call.1} parent=1 // pred_region
      %679 = dma.done [#allocation8], 16
    $region53: #{tpu_custom_call.1} parent=1 // pred_fallthru
      _
    // Predicated region
    $region54: #{tpu_custom_call.1} parent=1 // pred_check
      _
    $region55: #{tpu_custom_call.1} parent=1 // pred_check_branch
      %681 = sbr.rel (0) target = $region57
    $region56: #{tpu_custom_call.1} parent=1 // pred_region
      %682 = dma.done [#allocation8], 16
    $region57: #{tpu_custom_call.1} parent=1 // pred_fallthru
      _
    %683 = vsyncpa [#allocation6], 1
    %684 = vsyncpa [#allocation8], 1

</llo_original>
